<compile_context>
chip_gen: v7x
topology: tpu7x:2x2x1
jax: 0.10.0
libtpu: 0.0.40
codegen_flags: <defaults>
</compile_context>

<pallas_src>
import math

import jax
import jax.numpy as jnp
from jax import lax
from jax.experimental import pallas as pl
from jax.experimental.pallas import tpu as pltpu

_EPS = 1e-8


def _styleconv_kernel(smod_ref, weight_ref, xcols_ref, noise_ref, nscale_ref,
                      bias_ref, out_ref, wmod_ref):
    """One (batch, spatial-tile) grid step.

    smod_ref:   (1, 1, K)      f32   per-input-channel modulation, tiled over taps
    weight_ref: (C_out, K)     f32   shared conv weight, (kh, kw, ci)-flattened K
    xcols_ref:  (1, K, tHW)    bf16  im2col slab for this spatial tile
    noise_ref:  (1, 1, tHW)    f32
    nscale_ref: (C_out, 1)     f32
    bias_ref:   (C_out, 1)     f32
    out_ref:    (1, C_out, tHW) f32
    wmod_ref:   (C_out, K)     bf16  VMEM scratch (per-batch modulated weight)
    """
    # ---- modulate + demodulate once per batch element (spatial axis inner) ----
    @pl.when(pl.program_id(1) == 0)
    def _():
        w = weight_ref[...] * smod_ref[0]                                # (C_out, K) f32
        d = lax.rsqrt(jnp.sum(w * w, axis=1, keepdims=True) + _EPS)      # (C_out, 1)
        wmod_ref[...] = (w * d).astype(wmod_ref.dtype)                   # bf16 for MXU

    # ---- grouped conv for this tile: single bf16 MXU contraction, f32 acc ----
    acc = jnp.dot(wmod_ref[...], xcols_ref[0],
                  preferred_element_type=jnp.float32)                    # (C_out, tHW)

    # ---- NoiseInjection + bias + fused_leaky_relu (slope 0.2, gain sqrt(2)) ----
    out = acc + nscale_ref[...] * noise_ref[0] + bias_ref[...]
    out_ref[0] = jnp.where(out >= 0.0, out, 0.2 * out) * math.sqrt(2.0)


def _pick_spatial_tile(hw, k_dim, elem_bytes=2, budget_bytes=16 * 1024 * 1024):
    """Largest lane tile that divides HW, is a multiple of 128 (or the full
    extent), and whose double-buffered bf16 xcols block stays under budget."""
    cap = max(128, budget_bytes // (2 * k_dim * elem_bytes))
    if hw <= cap or hw % 128 != 0:
        return hw
    t = min(cap, hw) // 128 * 128
    while t >= 128:
        if hw % t == 0:
            return t
        t -= 128
    return hw


def style_conv(x, style, params, kernel_size=3, noise=None, noise_key=None):
    """Forward pass of StyleConv (mask=None, upsample=False, demodulate=True)."""
    B, C_in, H, W = x.shape
    aff_wT = params["affine_wT"]      # (style_dim, C_in)
    aff_b = params["affine_b"]        # (1, C_in)
    conv_w = params["conv_w"]         # (C_out, C_in, k, k)
    nscale = params["noise_scale"]    # (C_out, 1)
    bias = params["bias"]             # (C_out, 1)
    C_out = conv_w.shape[0]
    k = kernel_size
    kk = k * k
    K = kk * C_in
    p = k // 2
    HW = H * W

    # --- host glue ---------------------------------------------------------
    # Style affine (LinearLayer) -> per-input-channel scale, tiled over the kk
    # taps so it lines up with the (kh, kw, ci)-flattened contraction axis.
    s = (style.astype(jnp.float32) @ aff_wT.astype(jnp.float32)
         + aff_b.reshape(1, C_in))                                       # (B, C_in)
    smod = jnp.tile(s, (1, kk)).reshape(B, 1, K)                         # (B, 1, K)

    # Conv weight flattened to (C_out, kk*C_in) with (kh, kw, ci) K-order.
    weight_r = jnp.transpose(conv_w, (0, 2, 3, 1)).reshape(C_out, K)
    weight_r = weight_r.astype(jnp.float32)

    # im2col tap slabs; streamed in bf16 (the dominant HBM stream).
    xpad = jnp.pad(x, ((0, 0), (0, 0), (p, p), (p, p)))
    cols = [xpad[:, :, kh:kh + H, kw:kw + W]
            for kh in range(k) for kw in range(k)]                       # (B,C_in,H,W) each
    xcols = jnp.stack(cols, axis=1).reshape(B, K, HW).astype(jnp.bfloat16)

    # NoiseInjection noise (scale_factor is a learnable param, zero-init in torch).
    if noise is None:
        if noise_key is None:
            noise_key = jax.random.PRNGKey(1)
        noise = jax.random.normal(noise_key, (B, 1, HW), jnp.float32)
    noise = noise.reshape(B, 1, HW).astype(jnp.float32)

    # Lane-dense spatial tile: multiple of 128 dividing HW, sized so the
    # double-buffered bf16 xcols block fits comfortably in VMEM (incl. v7x).
    thw = _pick_spatial_tile(HW, K)
    n_hw = HW // thw

    out = pl.pallas_call(
        _styleconv_kernel,
        out_shape=jax.ShapeDtypeStruct((B, C_out, HW), jnp.float32),
        grid_spec=pltpu.PrefetchScalarGridSpec(
            num_scalar_prefetch=0,
            grid=(B, n_hw),                       # batch outer, spatial tiles inner
            in_specs=[
                pl.BlockSpec((1, 1, K), lambda b, h: (b, 0, 0)),         # modulation row
                pl.BlockSpec((C_out, K), lambda b, h: (0, 0)),           # conv weight
                pl.BlockSpec((1, K, thw), lambda b, h: (b, 0, h)),       # im2col slab
                pl.BlockSpec((1, 1, thw), lambda b, h: (b, 0, h)),       # noise
                pl.BlockSpec((C_out, 1), lambda b, h: (0, 0)),           # noise scale
                pl.BlockSpec((C_out, 1), lambda b, h: (0, 0)),           # bias
            ],
            out_specs=pl.BlockSpec((1, C_out, thw), lambda b, h: (b, 0, h)),
            scratch_shapes=[pltpu.VMEM((C_out, K), jnp.bfloat16)],
        ),
        compiler_params=pltpu.CompilerParams(
            # Batch axis can shard across cores; the spatial axis carries the
            # per-batch weight scratch, so it must stay sequential.
            dimension_semantics=("parallel", "arbitrary"),
            vmem_limit_bytes=48 * 1024 * 1024,
        ),
    )(smod, weight_r, xcols, noise, nscale, bias)
    return out.reshape(B, C_out, H, W)


def ref_style_conv(x, style, params, noise, kernel_size=3):
    """Pure-JAX f32 reference mirroring the PyTorch forward."""
    aff_wT = params["affine_wT"]
    aff_b = params["affine_b"]
    conv_w = params["conv_w"]
    nscale = params["noise_scale"]
    bias = params["bias"]
    B, C_in, H, W = x.shape
    C_out, _, k, _ = conv_w.shape
    p = k // 2
    s = style @ aff_wT + aff_b.reshape(1, -1)                            # (B, C_in)
    w = conv_w[None] * s[:, None, :, None, None]                         # (B,C_out,C_in,k,k)
    d = lax.rsqrt(jnp.sum(w * w, axis=(2, 3, 4)) + _EPS)
    w = w * d[:, :, None, None, None]
    outs = []
    for b in range(B):
        o = lax.conv_general_dilated(
            x[b:b + 1], w[b], window_strides=(1, 1),
            padding=[(p, p), (p, p)],
            dimension_numbers=('NCHW', 'OIHW', 'NCHW'),
            precision=lax.Precision.HIGHEST)
        outs.append(o[0])
    out = jnp.stack(outs, axis=0)
    out = out + nscale.reshape(1, C_out, 1, 1) * noise.reshape(B, 1, H, W)
    out = out + bias.reshape(1, C_out, 1, 1)
    out = jnp.where(out >= 0, out, 0.2 * out) * math.sqrt(2.0)
    return out


if __name__ == "__main__":
    # Small shapes consistent with the module's forward (channels kept at 8 so
    # C_out fills a sublane, per the perf review note on toy shapes).
    B, C_in, C_out, H, W = 2, 8, 8, 16, 16
    style_dim = 8
    k = 3

    key = jax.random.PRNGKey(0)
    k_x, k_s, k_w, k_a, k_n, k_b = jax.random.split(key, 6)

    x = jax.random.normal(k_x, (B, C_in, H, W), jnp.float32)
    style = jax.random.normal(k_s, (B, style_dim), jnp.float32)

    # --- deterministic parameter init (shapes from the module's __init__) ---
    # conv weight: kaiming_normal_(a=0.2) -> std = sqrt(2/(1+a^2)) / sqrt(fan_in)
    fan_in = C_in * k * k
    w_std = math.sqrt(2.0 / (1.0 + 0.2 ** 2)) / math.sqrt(fan_in)
    conv_w = jax.random.normal(k_w, (C_out, C_in, k, k), jnp.float32) * w_std
    # LinearLayer(style_dim, C_in, bias_init=1.0): equalized-lr scale in weight
    aff_wT = (jax.random.normal(k_a, (style_dim, C_in), jnp.float32)
              / math.sqrt(style_dim))
    aff_b = jnp.ones((1, C_in), jnp.float32)                   # bias_init = 1.0
    # bias / noise scale are zero-init in the module; use small nonzero values
    # here so the noise-injection and bias paths are actually exercised.
    bias = 0.1 * jax.random.normal(k_b, (C_out, 1), jnp.float32)
    nscale = 0.1 * jax.random.normal(k_n, (C_out, 1), jnp.float32)

    params = dict(affine_wT=aff_wT, affine_b=aff_b, conv_w=conv_w,
                  noise_scale=nscale, bias=bias)

    # Shared explicit noise so the kernel and the reference see the same draw.
    noise = jax.random.normal(jax.random.PRNGKey(1), (B, 1, H * W), jnp.float32)

    out = style_conv(x, style, params, kernel_size=k, noise=noise)
    out = jax.block_until_ready(out)

    ref = jax.block_until_ready(ref_style_conv(x, style, params, noise,
                                               kernel_size=k))

    assert out.shape == (B, C_out, H, W)
    # bf16 streaming of x / modulated weight (f32 accumulation) vs f32 reference.
    assert jnp.allclose(out, ref, rtol=5e-2, atol=5e-2), "mismatch vs reference"
    print("KERNEL_OK")
</pallas_src>

<mosaic_0001>
module attributes {stable_mosaic.version = 11 : i64} {
  func.func @_styleconv_kernel(%arg0: i32, %arg1: i32, %arg2: memref<1x1x72xf32, #tpu.memory_space<vmem>>, %arg3: memref<8x72xf32, #tpu.memory_space<vmem>>, %arg4: memref<1x72x256xbf16, #tpu.memory_space<vmem>>, %arg5: memref<1x1x256xf32, #tpu.memory_space<vmem>>, %arg6: memref<8x1xf32, #tpu.memory_space<vmem>>, %arg7: memref<8x1xf32, #tpu.memory_space<vmem>>, %arg8: memref<1x8x256xf32, #tpu.memory_space<vmem>>, %arg9: memref<8x72xbf16, #tpu.memory_space<vmem>>) attributes {dimension_semantics = [#tpu.dimension_semantics<parallel>, #tpu.dimension_semantics<arbitrary>], iteration_bounds = array<i64: 2, 1>, scalar_prefetch = 0 : i64, scratch_operands = 1 : i64, tpu.core_type = #tpu.core_type<tc>, window_params = [{transform_indices = @transform_0, window_bounds = array<i64: 1, 1, 72>}, {pipeline_mode = #tpu.pipeline_mode<synchronous>, transform_indices = @transform_1, window_bounds = array<i64: 8, 72>}, {transform_indices = @transform_2, window_bounds = array<i64: 1, 72, 256>}, {transform_indices = @transform_3, window_bounds = array<i64: 1, 1, 256>}, {pipeline_mode = #tpu.pipeline_mode<synchronous>, transform_indices = @transform_4, window_bounds = array<i64: 8, 1>}, {pipeline_mode = #tpu.pipeline_mode<synchronous>, transform_indices = @transform_5, window_bounds = array<i64: 8, 1>}, {transform_indices = @transform_6, window_bounds = array<i64: 1, 8, 256>}]} {
    %c0_i32 = arith.constant 0 : i32
    %0 = arith.cmpi eq, %arg1, %c0_i32 : i32
    %1 = arith.extui %0 : i1 to i32
    %c0_i32_0 = arith.constant 0 : i32
    %2 = arith.cmpi ne, %1, %c0_i32_0 : i32
    scf.if %2 {
      %c0_18 = arith.constant 0 : index
      %c0_19 = arith.constant 0 : index
      %27 = vector.load %arg3[%c0_18, %c0_19] : memref<8x72xf32, #tpu.memory_space<vmem>>, vector<8x72xf32>
      %c0_20 = arith.constant 0 : index
      %c0_21 = arith.constant 0 : index
      %c0_22 = arith.constant 0 : index
      %28 = vector.load %arg2[%c0_20, %c0_21, %c0_22] : memref<1x1x72xf32, #tpu.memory_space<vmem>>, vector<1x1x72xf32>
      %29 = vector.shape_cast %28 : vector<1x1x72xf32> to vector<1x72xf32>
      %30 = vector.broadcast %29 : vector<1x72xf32> to vector<8x72xf32>
      %31 = arith.mulf %27, %30 : vector<8x72xf32>
      %32 = arith.mulf %31, %31 : vector<8x72xf32>
      %cst_23 = arith.constant dense<0.000000e+00> : vector<8xf32>
      %33 = vector.multi_reduction <add>, %32, %cst_23 [1] : vector<8x72xf32> to vector<8xf32>
      %34 = vector.shape_cast %33 : vector<8xf32> to vector<8x1xf32>
      %cst_24 = arith.constant 9.99999993E-9 : f32
      %35 = vector.broadcast %cst_24 : f32 to vector<8x1xf32>
      %36 = arith.addf %34, %35 : vector<8x1xf32>
      %37 = math.rsqrt %36 : vector<8x1xf32>
      %38 = vector.broadcast %37 : vector<8x1xf32> to vector<8x72xf32>
      %39 = arith.mulf %31, %38 : vector<8x72xf32>
      %40 = arith.truncf %39 : vector<8x72xf32> to vector<8x72xbf16>
      %c0_25 = arith.constant 0 : index
      %c0_26 = arith.constant 0 : index
      %41 = vector.load %arg9[%c0_25, %c0_26] : memref<8x72xbf16, #tpu.memory_space<vmem>>, vector<8x72xbf16>
      tpu.vector_store %arg9[%c0_25, %c0_26], %40 {strides = array<i32>} : memref<8x72xbf16, #tpu.memory_space<vmem>>, vector<8x72xbf16>,
    } else {
    }
    %c0 = arith.constant 0 : index
    %c0_1 = arith.constant 0 : index
    %3 = vector.load %arg9[%c0, %c0_1] : memref<8x72xbf16, #tpu.memory_space<vmem>>, vector<8x72xbf16>
    %c0_2 = arith.constant 0 : index
    %c0_3 = arith.constant 0 : index
    %c0_4 = arith.constant 0 : index
    %4 = vector.load %arg4[%c0_2, %c0_3, %c0_4] : memref<1x72x256xbf16, #tpu.memory_space<vmem>>, vector<1x72x256xbf16>
    %5 = vector.shape_cast %4 : vector<1x72x256xbf16> to vector<72x256xbf16>
    %cst = arith.constant dense<0.000000e+00> : vector<8x256xf32>
    %6 = tpu.matmul %3, %5, %cst {dimension_numbers = #tpu.dot_dimension_numbers<[1], [0], [0], [1], [0, 0, 1, 1], [], []>} : vector<8x72xbf16>, vector<72x256xbf16>, vector<8x256xf32> -> vector<8x256xf32>
    %c0_5 = arith.constant 0 : index
    %c0_6 = arith.constant 0 : index
    %7 = vector.load %arg6[%c0_5, %c0_6] : memref<8x1xf32, #tpu.memory_space<vmem>>, vector<8x1xf32>
    %c0_7 = arith.constant 0 : index
    %c0_8 = arith.constant 0 : index
    %c0_9 = arith.constant 0 : index
    %8 = vector.load %arg5[%c0_7, %c0_8, %c0_9] : memref<1x1x256xf32, #tpu.memory_space<vmem>>, vector<1x1x256xf32>
    %9 = vector.shape_cast %8 : vector<1x1x256xf32> to vector<1x256xf32>
    %10 = vector.broadcast %7 : vector<8x1xf32> to vector<8x256xf32>
    %11 = vector.broadcast %9 : vector<1x256xf32> to vector<8x256xf32>
    %12 = arith.mulf %10, %11 : vector<8x256xf32>
    %13 = arith.addf %6, %12 : vector<8x256xf32>
    %c0_10 = arith.constant 0 : index
    %c0_11 = arith.constant 0 : index
    %14 = vector.load %arg7[%c0_10, %c0_11] : memref<8x1xf32, #tpu.memory_space<vmem>>, vector<8x1xf32>
    %15 = vector.broadcast %14 : vector<8x1xf32> to vector<8x256xf32>
    %16 = arith.addf %13, %15 : vector<8x256xf32>
    %cst_12 = arith.constant 0.000000e+00 : f32
    %17 = vector.broadcast %cst_12 : f32 to vector<8x256xf32>
    %18 = arith.cmpf oge, %16, %17 : vector<8x256xf32>
    %cst_13 = arith.constant 2.000000e-01 : f32
    %19 = vector.broadcast %cst_13 : f32 to vector<8x256xf32>
    %20 = arith.mulf %19, %16 : vector<8x256xf32>
    %21 = arith.select %18, %16, %20 : vector<8x256xi1>, vector<8x256xf32>
    %cst_14 = arith.constant 1.41421354 : f32
    %22 = vector.broadcast %cst_14 : f32 to vector<8x256xf32>
    %23 = arith.mulf %21, %22 : vector<8x256xf32>
    %c0_15 = arith.constant 0 : index
    %c0_16 = arith.constant 0 : index
    %c0_17 = arith.constant 0 : index
    %24 = vector.load %arg8[%c0_15, %c0_16, %c0_17] : memref<1x8x256xf32, #tpu.memory_space<vmem>>, vector<1x8x256xf32>
    %25 = vector.shape_cast %24 : vector<1x8x256xf32> to vector<8x256xf32>
    %26 = vector.shape_cast %23 : vector<8x256xf32> to vector<1x8x256xf32>
    tpu.vector_store %arg8[%c0_15, %c0_16, %c0_17], %26 {strides = array<i32>} : memref<1x8x256xf32, #tpu.memory_space<vmem>>, vector<1x8x256xf32>,
    return
  }
  func.func @transform_0(%arg0: i32, %arg1: i32) -> (i32, i32, i32) {
    %c0_i32 = arith.constant 0 : i32
    %c0_i32_0 = arith.constant 0 : i32
    %c0_i32_1 = arith.constant 0 : i32
    return %arg0, %c0_i32, %c0_i32_0 : i32, i32, i32
  }
  func.func @transform_1(%arg0: i32, %arg1: i32) -> (i32, i32) {
    %c0_i32 = arith.constant 0 : i32
    %c0_i32_0 = arith.constant 0 : i32
    %c0_i32_1 = arith.constant 0 : i32
    return %c0_i32, %c0_i32_0 : i32, i32
  }
  func.func @transform_2(%arg0: i32, %arg1: i32) -> (i32, i32, i32) {
    %c0_i32 = arith.constant 0 : i32
    %c0_i32_0 = arith.constant 0 : i32
    return %arg0, %c0_i32, %arg1 : i32, i32, i32
  }
  func.func @transform_3(%arg0: i32, %arg1: i32) -> (i32, i32, i32) {
    %c0_i32 = arith.constant 0 : i32
    %c0_i32_0 = arith.constant 0 : i32
    return %arg0, %c0_i32, %arg1 : i32, i32, i32
  }
  func.func @transform_4(%arg0: i32, %arg1: i32) -> (i32, i32) {
    %c0_i32 = arith.constant 0 : i32
    %c0_i32_0 = arith.constant 0 : i32
    %c0_i32_1 = arith.constant 0 : i32
    return %c0_i32, %c0_i32_0 : i32, i32
  }
  func.func @transform_5(%arg0: i32, %arg1: i32) -> (i32, i32) {
    %c0_i32 = arith.constant 0 : i32
    %c0_i32_0 = arith.constant 0 : i32
    %c0_i32_1 = arith.constant 0 : i32
    return %c0_i32, %c0_i32_0 : i32, i32
  }
  func.func @transform_6(%arg0: i32, %arg1: i32) -> (i32, i32, i32) {
    %c0_i32 = arith.constant 0 : i32
    %c0_i32_0 = arith.constant 0 : i32
    return %arg0, %c0_i32, %arg1 : i32, i32, i32
  }
}

</mosaic_0001>

<llo_original>
// kernel: tpu_custom_call.1
$region0: #{tpu_custom_call.1}
  #allocation0 [shape = 'u32[]', space=smem, size = 0x4, offset = 0x4, fixed_abs, tag = 'smem constant byte address 0x4 - core index']
  #allocation1 [shape = 'u32[144,128]{1,0:T(1,128)}', space=vmem, size = 0x12000, scoped, tag = 'internal scratch']
  #allocation2 [shape = 'bf16[8,72]{1,0:T(8,128)(2,1)}', space=vmem, size = 0x800, scoped, tag = 'scratch operand']
  %s0 = inlined_call_operand.vmem [shape: f32[2,1,72], index: 0, kind: input, shape index: {}]
  %s1 = inlined_call_operand.vmem [shape: f32[8,72], index: 1, kind: input, shape index: {}]
  %s2 = inlined_call_operand.hbm [shape: bf16[2,72,256], index: 2, kind: input, shape index: {}]
  %s3 = inlined_call_operand.vmem [shape: f32[2,1,256], index: 3, kind: input, shape index: {}]
  %s4 = inlined_call_operand.vmem [shape: f32[8,1], index: 4, kind: input, shape index: {}]
  %s5 = inlined_call_operand.vmem [shape: f32[8,1], index: 5, kind: input, shape index: {}]
  %s6 = inlined_call_operand.hbm [shape: f32[2,8,256], index: 6, kind: output, shape index: {}]
  %s7 = sld [smem:[#allocation0]]
  $region65: #{tpu_custom_call.1} parent=0
    _
  %s9 = ssub.s32 1, %s7
  %s10 = scalar_select 0, %s9, %s7
  $region1: #{tpu_custom_call.1} parent=0
    #allocation3 [shape = 'u8[73728]{0}', space=vmem, size = 0x12000, scoped, tag = 'input window, operand 2']
    #allocation4 [shape = 's32[2]{0}', space=sflag, size = 0x8, scoped, tag = 'scoped memory for tpu_custom_call.1']
    #allocation5 [shape = 's32[2]{0}', space=sflag, size = 0x8, scoped, tag = 'scoped memory for tpu_custom_call.1']
    #allocation6 [shape = 'u8[16384]{0}', space=vmem, size = 0x4000, scoped, tag = 'output window, operand 0']
    %11 = vsyncpa [#allocation4], 0
    %s12 = scalar_lea.sflag [#allocation4], 1
    %13 = vsyncpa %s12, 0
    %14 = vsyncpa [#allocation5], 0
    %s15 = scalar_lea.sflag [#allocation5], 1
    %16 = vsyncpa %s15, 0
    loop: start=0, step=1, limit=4
    $region2: #{tpu_custom_call.1} parent=1 // loop_pre_header
      _
    $region3: #{tpu_custom_call.1} parent=1 // loop_header
      %s18 = sphi 0, %s22
      %p19 = scmp.ge.s32.totalorder %s18, 4
      %s25 = sphi 0, %s37
      %s26 = sphi 0, %s33
      %s27 = sphi 0, %s25
      %s28 = sphi 0, %s26
      %s29 = sphi 0, %s27
      %s30 = sphi 0, %s28
      %s40 = sphi 0, %s42
      %s43 = sphi 0, %s40
      %s44 = sphi 0, %s43
      %s60 = sphi 0, %s44
      %s64 = sphi 0, %s64
      %s66 = sphi 0, %s64
      %s67 = sphi 0, %s66
      %s81 = sphi 0, %s67
      %s89 = sphi 0, %s91
      %s92 = sphi 0, %s89
      %s93 = sphi 0, %s92
      %s109 = sphi 0, %s93
      %s117 = sphi 0, %s119
      %s120 = sphi 0, %s117
      %s121 = sphi 0, %s120
      %s137 = sphi 0, %s121
      %s141 = sphi 0, %s141
      %s143 = sphi 0, %s141
      %s144 = sphi 0, %s143
      %s158 = sphi 0, %s144
      %s162 = sphi 0, %s162
      %s164 = sphi 0, %s162
      %s165 = sphi 0, %s164
      %s179 = sphi 0, %s165
      %s187 = sphi 0, %s189
      %s190 = sphi 0, %s187
      %s191 = sphi 0, %s190
      %s207 = sphi 0, %s191
    $region4: #{tpu_custom_call.1} parent=1 // loop_header_branch
      %21 = sbr.rel (%p19) target = $region8
    $region5: #{tpu_custom_call.1} parent=1 // loop_body
      %s23 = ssub.s32 %s18, 1
      %s24 = ssub.s32 %s18, 2
      %s31 = sadd.s32 1, %s26
      %p32 = scmp.ge.s32.totalorder %s31, 1
      %s33 = scalar_select %p32, 0, %s31
      %s34 = sadd.s32 1, %s25
      %s35 = scalar_select %p32, %s34, %s25
      %p36 = scmp.ge.s32.totalorder %s35, 2
      %s37 = scalar_select %p36, 0, %s35
      %s38 = ssub.s32 %s25, %s37
      %p39 = scmp.eq.s32.totalorder %s38, 0
      %s41 = sadd.s32 %s40, 1
      %s42 = scalar_select %p39, %s40, %s41
      %p45 = pneg %p39
      %p46 = scmp.eq.s32.totalorder %s18, 1
      %p47 = por %p45, %p46
      %p48 = scmp.ne.s32.totalorder %s40, %s43
      %p49 = scmp.eq.s32.totalorder %s18, 0
      %p50 = por %p48, %p49
      %p51 = scmp.ne.s32.totalorder %s40, %s43
      %p52 = scmp.eq.s32.totalorder %s23, 1
      %p53 = por %p51, %p52
      %p54 = scmp.ne.s32.totalorder %s43, %s44
      %p55 = scmp.eq.s32.totalorder %s23, 0
      %p56 = por %p54, %p55
      %p57 = scmp.ne.s32.totalorder %s43, %s44
      %p58 = scmp.eq.s32.totalorder %s24, 1
      %p59 = por %p57, %p58
      %p61 = scmp.ne.s32.totalorder %s44, %s60
      %p62 = scmp.eq.s32.totalorder %s24, 0
      %p63 = por %p61, %p62
      %s65 = sadd.s32 %s64, 1
      %p68 = scmp.eq.s32.totalorder %s18, 1
      %p69 = scmp.ne.s32.totalorder %s64, %s66
      %p70 = scmp.eq.s32.totalorder %s18, 0
      %p71 = por %p69, %p70
      %p72 = scmp.ne.s32.totalorder %s64, %s66
      %p73 = scmp.eq.s32.totalorder %s23, 1
      %p74 = por %p72, %p73
      %p75 = scmp.ne.s32.totalorder %s66, %s67
      %p76 = scmp.eq.s32.totalorder %s23, 0
      %p77 = por %p75, %p76
      %p78 = scmp.ne.s32.totalorder %s66, %s67
      %p79 = scmp.eq.s32.totalorder %s24, 1
      %p80 = por %p78, %p79
      %p82 = scmp.ne.s32.totalorder %s67, %s81
      %p83 = scmp.eq.s32.totalorder %s24, 0
      %p84 = por %p82, %p83
      %s85 = ssub.s32 %s25, %s37
      %s86 = ssub.s32 %s26, %s33
      %s87 = sor.u32 %s85, %s86
      %p88 = scmp.eq.s32.totalorder %s87, 0
      %s90 = sadd.s32 %s89, 1
      %s91 = scalar_select %p88, %s89, %s90
      %p94 = pneg %p88
      %p95 = scmp.eq.s32.totalorder %s18, 1
      %p96 = por %p94, %p95
      %p97 = scmp.ne.s32.totalorder %s89, %s92
      %p98 = scmp.eq.s32.totalorder %s18, 0
      %p99 = por %p97, %p98
      %p100 = scmp.ne.s32.totalorder %s89, %s92
      %p101 = scmp.eq.s32.totalorder %s23, 1
      %p102 = por %p100, %p101
      %p103 = scmp.ne.s32.totalorder %s92, %s93
      %p104 = scmp.eq.s32.totalorder %s23, 0
      %p105 = por %p103, %p104
      %p106 = scmp.ne.s32.totalorder %s92, %s93
      %p107 = scmp.eq.s32.totalorder %s24, 1
      %p108 = por %p106, %p107
      %p110 = scmp.ne.s32.totalorder %s93, %s109
      %p111 = scmp.eq.s32.totalorder %s24, 0
      %p112 = por %p110, %p111
      %s113 = ssub.s32 %s25, %s37
      %s114 = ssub.s32 %s26, %s33
      %s115 = sor.u32 %s113, %s114
      %p116 = scmp.eq.s32.totalorder %s115, 0
      %s118 = sadd.s32 %s117, 1
      %s119 = scalar_select %p116, %s117, %s118
      %p122 = pneg %p116
      %p123 = scmp.eq.s32.totalorder %s18, 1
      %p124 = por %p122, %p123
      %p125 = scmp.ne.s32.totalorder %s117, %s120
      %p126 = scmp.eq.s32.totalorder %s18, 0
      %p127 = por %p125, %p126
      %p128 = scmp.ne.s32.totalorder %s117, %s120
      %p129 = scmp.eq.s32.totalorder %s23, 1
      %p130 = por %p128, %p129
      %p131 = scmp.ne.s32.totalorder %s120, %s121
      %p132 = scmp.eq.s32.totalorder %s23, 0
      %p133 = por %p131, %p132
      %p134 = scmp.ne.s32.totalorder %s120, %s121
      %p135 = scmp.eq.s32.totalorder %s24, 1
      %p136 = por %p134, %p135
      %p138 = scmp.ne.s32.totalorder %s121, %s137
      %p139 = scmp.eq.s32.totalorder %s24, 0
      %p140 = por %p138, %p139
      %s142 = sadd.s32 %s141, 1
      %p145 = scmp.eq.s32.totalorder %s18, 1
      %p146 = scmp.ne.s32.totalorder %s141, %s143
      %p147 = scmp.eq.s32.totalorder %s18, 0
      %p148 = por %p146, %p147
      %p149 = scmp.ne.s32.totalorder %s141, %s143
      %p150 = scmp.eq.s32.totalorder %s23, 1
      %p151 = por %p149, %p150
      %p152 = scmp.ne.s32.totalorder %s143, %s144
      %p153 = scmp.eq.s32.totalorder %s23, 0
      %p154 = por %p152, %p153
      %p155 = scmp.ne.s32.totalorder %s143, %s144
      %p156 = scmp.eq.s32.totalorder %s24, 1
      %p157 = por %p155, %p156
      %p159 = scmp.ne.s32.totalorder %s144, %s158
      %p160 = scmp.eq.s32.totalorder %s24, 0
      %p161 = por %p159, %p160
      %s163 = sadd.s32 %s162, 1
      %p166 = scmp.eq.s32.totalorder %s18, 1
      %p167 = scmp.ne.s32.totalorder %s162, %s164
      %p168 = scmp.eq.s32.totalorder %s18, 0
      %p169 = por %p167, %p168
      %p170 = scmp.ne.s32.totalorder %s162, %s164
      %p171 = scmp.eq.s32.totalorder %s23, 1
      %p172 = por %p170, %p171
      %p173 = scmp.ne.s32.totalorder %s164, %s165
      %p174 = scmp.eq.s32.totalorder %s23, 0
      %p175 = por %p173, %p174
      %p176 = scmp.ne.s32.totalorder %s164, %s165
      %p177 = scmp.eq.s32.totalorder %s24, 1
      %p178 = por %p176, %p177
      %p180 = scmp.ne.s32.totalorder %s165, %s179
      %p181 = scmp.eq.s32.totalorder %s24, 0
      %p182 = por %p180, %p181
      %s183 = ssub.s32 %s25, %s37
      %s184 = ssub.s32 %s26, %s33
      %s185 = sor.u32 %s183, %s184
      %p186 = scmp.eq.s32.totalorder %s185, 0
      %s188 = sadd.s32 %s187, 1
      %s189 = scalar_select %p186, %s187, %s188
      %p192 = pneg %p186
      %p193 = scmp.eq.s32.totalorder %s18, 1
      %p194 = por %p192, %p193
      %p195 = scmp.ne.s32.totalorder %s187, %s190
      %p196 = scmp.eq.s32.totalorder %s18, 0
      %p197 = por %p195, %p196
      %p198 = scmp.ne.s32.totalorder %s187, %s190
      %p199 = scmp.eq.s32.totalorder %s23, 1
      %p200 = por %p198, %p199
      %p201 = scmp.ne.s32.totalorder %s190, %s191
      %p202 = scmp.eq.s32.totalorder %s23, 0
      %p203 = por %p201, %p202
      %p204 = scmp.ne.s32.totalorder %s190, %s191
      %p205 = scmp.eq.s32.totalorder %s24, 1
      %p206 = por %p204, %p205
      %p208 = scmp.ne.s32.totalorder %s191, %s207
      %p209 = scmp.eq.s32.totalorder %s24, 0
      %p210 = por %p208, %p209
      %p211 = scmp.le.s32.totalorder 1, %s18
      %p212 = scmp.lt.s32.totalorder %s18, 3
      %p213 = pnand %p211, %p212
      %p214 = pneg %p213
      // Predicated region
      $region9: #{tpu_custom_call.1} parent=5 // pred_check
        _
      $region10: #{tpu_custom_call.1} parent=5 // pred_check_branch
        %216 = sbr.rel (%p213) target = $region12
      $region11: #{tpu_custom_call.1} parent=5 // pred_region
        %s217 = ssub.s32 %s18, 1
        // Predicated region
        $region13: #{tpu_custom_call.1} parent=11 // pred_check
          %p218 = pneg %p77
        $region14: #{tpu_custom_call.1} parent=11 // pred_check_branch
          %220 = sbr.rel (%p218) target = $region16
        $region15: #{tpu_custom_call.1} parent=11 // pred_region
          _
        $region16: #{tpu_custom_call.1} parent=11 // pred_fallthru
          _
        // Predicated region
        $region17: #{tpu_custom_call.1} parent=11 // pred_check
          %p221 = pneg %p154
        $region18: #{tpu_custom_call.1} parent=11 // pred_check_branch
          %223 = sbr.rel (%p221) target = $region20
        $region19: #{tpu_custom_call.1} parent=11 // pred_region
          _
        $region20: #{tpu_custom_call.1} parent=11 // pred_fallthru
          _
        // Predicated region
        $region21: #{tpu_custom_call.1} parent=11 // pred_check
          %p224 = pneg %p175
        $region22: #{tpu_custom_call.1} parent=11 // pred_check_branch
          %226 = sbr.rel (%p224) target = $region24
        $region23: #{tpu_custom_call.1} parent=11 // pred_region
          _
        $region24: #{tpu_custom_call.1} parent=11 // pred_fallthru
          _
      $region12: #{tpu_custom_call.1} parent=5 // pred_fallthru
        _
      %p227 = scmp.lt.s32.totalorder %s18, 2
      // Predicated region
      $region25: #{tpu_custom_call.1} parent=5 // pred_check
        %p228 = pneg %p227
      $region26: #{tpu_custom_call.1} parent=5 // pred_check_branch
        %230 = sbr.rel (%p228) target = $region28
      $region27: #{tpu_custom_call.1} parent=5 // pred_region
        // Predicated region
        $region29: #{tpu_custom_call.1} parent=27 // pred_check
          %p231 = pneg %p50
        $region30: #{tpu_custom_call.1} parent=27 // pred_check_branch
          %233 = sbr.rel (%p231) target = $region32
        $region31: #{tpu_custom_call.1} parent=27 // pred_region
          %p234 = scmp.lt.s32.totalorder %s25, 1
          %s235 = scalar_select %p234, %s25, 1
          %s236 = scalar_lea.vmem %s0, %s235
        $region32: #{tpu_custom_call.1} parent=27 // pred_fallthru
          _
        // Predicated region
        $region33: #{tpu_custom_call.1} parent=27 // pred_check
          %p237 = pneg %p99
        $region34: #{tpu_custom_call.1} parent=27 // pred_check_branch
          %239 = sbr.rel (%p237) target = $region36
        $region35: #{tpu_custom_call.1} parent=27 // pred_region
          %s240 = sand.u32 %s89, 1
          %s241 = scalar_lea.sflag [#allocation4], %s240
          %s242 = sand.u32 %s89, 1
          %s243 = smul.addr %s242, 72
          %s244 = scalar_lea.vmem [#allocation3], %s243
          %s245 = smul.u32 2, %s26
          %s247 = ssub.s32 1152, 1152
          %248 = vsyncadd %s241, %s247
          %s249 = smul.addr %s25, 18
          %s250 = sadd.s32 %s245, %s249
          %s251 = smul.addr %s250, 64
          %s252 = scalar_lea.hbm %s2, %s251
          %s253 = sshll.u32 %s244, 4
          %s254 = int_to_ptr.vmem [resolvable:$true] %s253
          %259 = dma.hbm_to_vmem [thread:$0]  %s252, 1152, %s254, %s241, 128, 128, 8
        $region36: #{tpu_custom_call.1} parent=27 // pred_fallthru
          _
        // Predicated region
        $region37: #{tpu_custom_call.1} parent=27 // pred_check
          %p260 = pneg %p127
        $region38: #{tpu_custom_call.1} parent=27 // pred_check_branch
          %262 = sbr.rel (%p260) target = $region40
        $region39: #{tpu_custom_call.1} parent=27 // pred_region
          %s263 = smul.u32 2, %s26
          %p264 = scmp.lt.s32.totalorder %s25, 1
          %s265 = scalar_select %p264, %s25, 1
          %p266 = scmp.lt.s32.totalorder %s263, 1
          %s267 = scalar_select %p266, %s263, 1
          %s268 = smul.addr %s265, 2
          %s269 = sadd.s32 %s267, %s268
          %s270 = scalar_lea.vmem %s3, %s269
          %s271 = smul.u32 2, %s26
        $region40: #{tpu_custom_call.1} parent=27 // pred_fallthru
          _
      $region28: #{tpu_custom_call.1} parent=5 // pred_fallthru
        _
      %p272 = scmp.le.s32.totalorder 1, %s18
      %p273 = scmp.lt.s32.totalorder %s18, 3
      %p274 = pnand %p272, %p273
      %p275 = pneg %p274
      // Predicated region
      $region41: #{tpu_custom_call.1} parent=5 // pred_check
        _
      $region42: #{tpu_custom_call.1} parent=5 // pred_check_branch
        %277 = sbr.rel (%p274) target = $region44
      $region43: #{tpu_custom_call.1} parent=5 // pred_region
        %s278 = ssub.s32 %s18, 1
        %s279 = sand.u32 %s92, 1
        %s280 = scalar_lea.sflag [#allocation4], %s279
        %s281 = sand.u32 %s92, 1
        %s282 = smul.addr %s281, 72
        %s283 = scalar_lea.vmem [#allocation3], %s282
        // Predicated region
        $region45: #{tpu_custom_call.1} parent=43 // pred_check
          %p284 = pneg %p105
        $region46: #{tpu_custom_call.1} parent=43 // pred_check_branch
          %286 = sbr.rel (%p284) target = $region48
        $region47: #{tpu_custom_call.1} parent=43 // pred_region
          %287 = dma.done %s280, 1152
        $region48: #{tpu_custom_call.1} parent=43 // pred_fallthru
          _
        %p288 = scmp.lt.s32.totalorder %s27, 1
        %s289 = scalar_select %p288, %s27, 1
        %s290 = scalar_lea.vmem %s0, %s289
        %p291 = pneg %p56
        %p292 = pneg %p53
        %p293 = pneg %p77
        %p294 = pneg %p74
        %s295 = sand.u32 %s92, 1
        %s296 = scalar_lea.sflag [#allocation4], %s295
        %s297 = sand.u32 %s92, 1
        %s298 = smul.addr %s297, 72
        %s299 = scalar_lea.vmem [#allocation3], %s298
        %p300 = pneg %p105
        %p301 = pneg %p102
        %s302 = smul.u32 2, %s28
        %p303 = scmp.lt.s32.totalorder %s27, 1
        %s304 = scalar_select %p303, %s27, 1
        %p305 = scmp.lt.s32.totalorder %s302, 1
        %s306 = scalar_select %p305, %s302, 1
        %s307 = smul.addr %s304, 2
        %s308 = sadd.s32 %s306, %s307
        %s309 = scalar_lea.vmem %s3, %s308
        %p310 = pneg %p133
        %p311 = pneg %p130
        %p312 = pneg %p154
        %p313 = pneg %p151
        %p314 = pneg %p175
        %p315 = pneg %p172
        %p316 = pneg %p203
        %p317 = pneg %p200
        %s318 = sand.u32 %s190, 1
        %s319 = scalar_lea.sflag [#allocation5], %s318
        %s320 = sand.u32 %s190, 1
        %s321 = smul.addr %s320, 16
        %s322 = scalar_lea.vmem [#allocation6], %s321
        %p323 = scmp.lt.s32.totalorder %s27, 1
        %s324 = scalar_select %p323, %s27, 1
        %s325 = scalar_lea.vmem %s0, %s324
        %s326 = smul.u32 2, %s28
        %s327 = smul.u32 2, %s28
        %p328 = scmp.lt.s32.totalorder %s27, 1
        %s329 = scalar_select %p328, %s27, 1
        %p330 = scmp.lt.s32.totalorder %s327, 1
        %s331 = scalar_select %p330, %s327, 1
        %s332 = smul.addr %s329, 2
        %s333 = sadd.s32 %s331, %s332
        %s334 = scalar_lea.vmem %s3, %s333
        %s335 = smul.u32 2, %s28
        %s336 = smul.u32 2, %s28
        %p338 = scmp.eq.s32.totalorder %s28, 0
        // Predicated region
        $region49: #{tpu_custom_call.1} parent=43 // pred_check
          %p339 = pneg %p338
        $region50: #{tpu_custom_call.1} parent=43 // pred_check_branch
          %341 = sbr.rel (%p339) target = $region52
        $region51: #{tpu_custom_call.1} parent=43 // pred_region
          %v342 = vld [vmem:[%s1] sm:$0xff]
          %v343 = vld [vmem:[%s325] sm:$0x1]
          %v345 = vlaneseq
          %v346 = vshrl.u32 %v345, 7
          %v347 = vsub.s32 0, %v346
          %v348 = vrot.slane %v343, %v347
          %v350 = vmul.f32 %v342, %v348
          %v351 = vmul.f32 %v350, %v350
          %vm352 = vcmask 588800
          %v353 = vsel %vm352, %v351, 0.0
          %354 = vadd.xlane.f32.xlu0 %v353
          %v355 = vpop.xlane.xlu0 %354
          %v356 = vadd.f32 %v355, 1e-08
          %v357 = vrsqrt.pop %v356
          %v358 = vmul.f32 %v350, %v357
          %v359 = vpack.c.bf16 %v358, %v358
          %vm360 = vcmask 584704
          %361 = vst.msk [vmem:[#allocation2] sm:$0xf] %vm360, %v359
        $region52: #{tpu_custom_call.1} parent=43 // pred_fallthru
          _
        %v362 = vld [vmem:[#allocation2] sm:$0xf]
        %v363 = vld [vmem:[%s283] sm:$0xff]
        %v364 = vld [vmem:[%s283 + $0x8] sm:$0xff]
        %v365 = vld [vmem:[%s283 + $0x10] sm:$0xff]
        %v366 = vld [vmem:[%s283 + $0x18] sm:$0xff]
        %v367 = vld [vmem:[%s283 + $0x20] sm:$0xff]
        %v368 = vld [vmem:[%s283 + $0x28] sm:$0xff]
        %v369 = vld [vmem:[%s283 + $0x30] sm:$0xff]
        %v370 = vld [vmem:[%s283 + $0x38] sm:$0xff]
        %v371 = vld [vmem:[%s283 + $0x40] sm:$0xff]
        %v372 = vld [vmem:[%s4] sm:$0xff]
        %v373 = vld [vmem:[%s334] sm:$0x3]
        %375 = vset.pattern.permute.xlu0 0
        %376 = vperm.xlu0 %375, %v372
        %v377 = vpop.permute.xlu0 %376
        %v380 = vlaneseq
        %v381 = vshrl.u32 %v380, 7
        %v382 = vsub.s32 0, %v381
        %v383 = vrot.slane %v373, %v382
        %v384 = vlaneseq
        %v385 = vshrl.u32 %v384, 7
        %v386 = vsub.s32 1, %v385
        %v387 = vrot.slane %v373, %v386
        %v390 = vmul.f32 %v377, %v383
        %v391 = vmul.f32 %v377, %v387
        %v401 = vunpack.c.l.b16 %v363
        %v402 = vunpack.c.h.b16 %v363
        %v403 = vunpack.c.l.b16 %v364
        %v404 = vunpack.c.h.b16 %v364
        %v405 = vunpack.c.l.b16 %v365
        %v406 = vunpack.c.h.b16 %v365
        %v407 = vunpack.c.l.b16 %v366
        %v408 = vunpack.c.h.b16 %v366
        %v409 = vunpack.c.l.b16 %v367
        %v410 = vunpack.c.h.b16 %v367
        %v411 = vunpack.c.l.b16 %v368
        %v412 = vunpack.c.h.b16 %v368
        %v413 = vunpack.c.l.b16 %v369
        %v414 = vunpack.c.h.b16 %v369
        %v415 = vunpack.c.l.b16 %v370
        %v416 = vunpack.c.h.b16 %v370
        %v417 = vunpack.c.l.b16 %v371
        %v418 = vunpack.c.h.b16 %v371
        %v419 = vpack.c.b16 %v403, %v401
        %v420 = vpack.c.b16 %v404, %v402
        %v421 = vpack.c.b16 %v407, %v405
        %v422 = vpack.c.b16 %v408, %v406
        %v423 = vpack.c.b16 %v411, %v409
        %v424 = vpack.c.b16 %v412, %v410
        %v425 = vpack.c.b16 %v415, %v413
        %v426 = vpack.c.b16 %v416, %v414
        %v427 = vpack.c.b16 %v417, %v417
        %v428 = vpack.c.b16 %v418, %v418
        %vm437 = vcmask 588800
        %v439 = vsel %vm437, %v362, 0
        %vm441 = vcmask 1043456
        %v443 = vsel %vm441, %v427, 0
        %v446 = vsel %vm441, %v428, 0
        %448 = vmatprep.subr.bf16.mxu0 %v420
        %449 = vmatpush1.bf16.msra.mxu0 %v419
        %450 = vmatprep.subr.bf16.mxu0 %v422
        %451 = vmatpush1.bf16.msra.mxu0 %v421
        %452 = vmatprep.subr.bf16.mxu0 %v424
        %453 = vmatpush1.bf16.msra.mxu0 %v423
        %454 = vmatprep.subr.bf16.mxu0 %v426
        %455 = vmatpush1.bf16.msra.mxu0 %v425
        %456 = vmatprep.subr.bf16.mxu0 %v446
        %457 = vmatpush1.bf16.msra.mxu0 %v443
        %458 = vmatprep.subr.bf16.mxu0 0
        %459 = vmatpush1.bf16.msra.mxu0 0
        %460 = vmatprep.subr.bf16.mxu0 0
        %461 = vmatpush1.bf16.msra.mxu0 0
        %462 = vmatprep.subr.bf16.mxu0 0
        %463 = vmatpush1.bf16.msra.mxu0 0
        %464 = vmatprep.subr.bf16.mxu0 0
        %465 = vmatpush1.bf16.msra.mxu0 0
        %466 = vmatprep.subr.bf16.mxu0 0
        %467 = vmatpush1.bf16.msra.mxu0 0
        %468 = vmatprep.subr.bf16.mxu0 0
        %469 = vmatpush1.bf16.msra.mxu0 0
        %470 = vmatprep.subr.bf16.mxu0 0
        %471 = vmatpush1.bf16.msra.mxu0 0
        %472 = vmatprep.subr.bf16.mxu0 0
        %473 = vmatpush1.bf16.msra.mxu0 0
        %474 = vmatprep.subr.bf16.mxu0 0
        %475 = vmatpush1.bf16.msra.mxu0 0
        %476 = vmatprep.subr.bf16.mxu0 0
        %477 = vmatpush1.bf16.msra.mxu0 0
        %478 = vmatprep.subr.bf16.mxu0 0
        %479 = vmatpush1.bf16.msra.mxu0 0
        %480 = vmatprep.mubr.bf16.mxu0 0
        %481 = vmatmul.mubr.bf16.gmra.mrb[0].mxu0 %v439
        %v482 = vpop.f32.mrb[0].mxu0
        %v483 = vadd.f32 %v390, %v482
        %v484 = vpop.f32.mrb[0].mxu0
        %v485 = vadd.f32 %v391, %v484
        %v486 = vpop.f32.mrb[0].mxu0
        %v487 = vpop.f32.mrb[0].mxu0
        %488 = vdwg.mxu0
        %v489 = vld [vmem:[%s5] sm:$0xff]
        %491 = vset.pattern.permute.xlu0 0
        %492 = vperm.xlu0 %491, %v489
        %v493 = vpop.permute.xlu0 %492
        %v495 = vadd.f32 %v483, %v493
        %v496 = vadd.f32 %v485, %v493
        %vm497 = vcmp.ge.f32.partialorder %v495, 0.0
        %vm498 = vcmp.ge.f32.partialorder %v496, 0.0
        %v499 = vmul.f32 %v495, 0.2
        %v500 = vmul.f32 %v496, 0.2
        %v501 = vsel %vm497, %v495, %v499
        %v502 = vsel %vm498, %v496, %v500
        %v503 = vmul.f32 %v501, 1.4142135
        %v504 = vmul.f32 %v502, 1.4142135
        %505 = vst [vmem:[%s322] sm:$0xff] %v503
        %506 = vst [vmem:[%s322 + $0x8] sm:$0xff] %v504
        %s507 = sand.u32 %s190, 1
        %s508 = scalar_lea.sflag [#allocation5], %s507
        %s509 = sand.u32 %s190, 1
        %s510 = smul.addr %s509, 16
        %s511 = scalar_lea.vmem [#allocation6], %s510
        // Predicated region
        $region53: #{tpu_custom_call.1} parent=43 // pred_check
          %p512 = pneg %p200
        $region54: #{tpu_custom_call.1} parent=43 // pred_check_branch
          %514 = sbr.rel (%p512) target = $region56
        $region55: #{tpu_custom_call.1} parent=43 // pred_region
          %s515 = smul.u32 2, %s28
          %s517 = ssub.s32 256, 256
          %518 = vsyncadd %s508, %s517
          %s519 = smul.addr %s27, 2
          %s520 = sadd.s32 %s515, %s519
          %s521 = smul.addr %s520, 128
          %s522 = scalar_lea.hbm %s6, %s521
          %s524 = sshll.u32 %s511, 4
          %s525 = int_to_ptr.vmem [resolvable:$true] %s524
          %527 = dma.vmem_to_hbm [thread:$0]  %s525, 256, %s522, %s508
        $region56: #{tpu_custom_call.1} parent=43 // pred_fallthru
          _
      $region44: #{tpu_custom_call.1} parent=5 // pred_fallthru
        _
      %p528 = scmp.le.s32.totalorder 2, %s18
      // Predicated region
      $region57: #{tpu_custom_call.1} parent=5 // pred_check
        %p529 = pneg %p528
      $region58: #{tpu_custom_call.1} parent=5 // pred_check_branch
        %531 = sbr.rel (%p529) target = $region60
      $region59: #{tpu_custom_call.1} parent=5 // pred_region
        %s532 = ssub.s32 %s18, 2
        // Predicated region
        $region61: #{tpu_custom_call.1} parent=59 // pred_check
          %p533 = pneg %p206
        $region62: #{tpu_custom_call.1} parent=59 // pred_check_branch
          %535 = sbr.rel (%p533) target = $region64
        $region63: #{tpu_custom_call.1} parent=59 // pred_region
          %s536 = sand.u32 %s191, 1
          %s537 = scalar_lea.sflag [#allocation5], %s536
          %s538 = sand.u32 %s191, 1
          %s539 = smul.addr %s538, 16
          %s540 = scalar_lea.vmem [#allocation6], %s539
          %541 = dma.done %s537, 256
        $region64: #{tpu_custom_call.1} parent=59 // pred_fallthru
          _
      $region60: #{tpu_custom_call.1} parent=5 // pred_fallthru
        _
    $region6: #{tpu_custom_call.1} parent=1 // loop_footer
      %s22 = sadd.s32 1, %s18
    $region7: #{tpu_custom_call.1} parent=1 // loop_footer_branch
      %17 = sbr.rel target = $region3
    $region8: #{tpu_custom_call.1} parent=1 // loop_exit
      _
    %542 = vsyncpa [#allocation4], 1
    %s543 = scalar_lea.sflag [#allocation4], 1
    %544 = vsyncpa %s543, 1
    %545 = vsyncpa [#allocation5], 1
    %s546 = scalar_lea.sflag [#allocation5], 1
    %547 = vsyncpa %s546, 1

</llo_original>
